<compile_context>
chip_gen: v5e
topology: v5e:2x2
jax: 0.10.0
libtpu: 0.0.40
codegen_flags: <defaults>
</compile_context>

<pallas_src>
import functools

import jax
import jax.numpy as jnp
from jax.experimental import pallas as pl
from jax.experimental.pallas import tpu as pltpu

_MIB = 1024 * 1024


# --------------------------------------------------------------------------
# Kernels
# --------------------------------------------------------------------------
def _ffn_kernel_direct(x_ref, wu_ref, wg_ref, bu_ref, bg_ref, w2_ref, b2_ref,
                       o_ref, *, compute_dtype):
    """Whole d_ff per step (k_tiles == 1): no accumulator round-trip."""
    x = x_ref[...]  # already compute_dtype (cast once in the wrapper)
    up = jnp.dot(x, wu_ref[...], preferred_element_type=jnp.float32) + bu_ref[...]
    gate = jnp.dot(x, wg_ref[...], preferred_element_type=jnp.float32) + bg_ref[...]
    a = (gate * jax.nn.sigmoid(gate)) * up          # SwiGLU in f32 (EUP sigmoid)
    out = jnp.dot(a.astype(compute_dtype), w2_ref[...],
                  preferred_element_type=jnp.float32) + b2_ref[...]
    o_ref[...] = out.astype(o_ref.dtype)


def _ffn_kernel_acc(x_ref, wu_ref, wg_ref, bu_ref, bg_ref, w2_ref, b2_ref,
                    o_ref, acc_ref, *, compute_dtype):
    """d_ff streamed in chunks (k axis last); f32 accumulator scratch."""
    k = pl.program_id(1)

    @pl.when(k == 0)
    def _():
        # Fold the fc2 bias into the accumulator init -> no epilogue add.
        acc_ref[...] = jnp.broadcast_to(b2_ref[...], acc_ref.shape)

    x = x_ref[...]
    up = jnp.dot(x, wu_ref[...], preferred_element_type=jnp.float32) + bu_ref[...]
    gate = jnp.dot(x, wg_ref[...], preferred_element_type=jnp.float32) + bg_ref[...]
    a = (gate * jax.nn.sigmoid(gate)) * up
    acc_ref[...] += jnp.dot(a.astype(compute_dtype), w2_ref[...],
                            preferred_element_type=jnp.float32)

    @pl.when(k == pl.num_programs(1) - 1)
    def _():
        o_ref[...] = acc_ref[...].astype(o_ref.dtype)


# --------------------------------------------------------------------------
# Device profiling + tile selection
# --------------------------------------------------------------------------
def _detect_generation(kind, vmem):
    k = (kind or "").lower()
    if "v7" in k:
        return "v7x"
    if "v6" in k:
        return "v6e"
    if "v5" in k:
        return "v5e"
    if vmem is not None and vmem <= 80 * _MIB:
        return "v7x"
    return "unknown"


def _tpu_profile():
    vmem = None
    try:
        info = pltpu.get_tpu_info()
        vmem = int(getattr(info, "vmem_capacity_bytes", 0)) or None
    except Exception:
        vmem = None
    kind = ""
    try:
        kind = jax.devices()[0].device_kind or ""
    except Exception:
        kind = ""
    gen = _detect_generation(kind, vmem)
    if vmem is None:
        vmem = 64 * _MIB if gen == "v7x" else 128 * _MIB
    # Physical VMEM minus headroom; never request >100 MiB anywhere,
    # ~52 MiB on v7x's 64 MiB parts.
    usable = int(max(32 * _MIB, min(100 * _MIB, vmem - 12 * _MIB)))
    if gen == "v6e":
        tm_cap, tf_cap = 1024, 512     # compute-bound needs ~680+ rows
    elif gen == "v5e":
        tm_cap, tf_cap = 512, 512      # compute-bound already at ~240 rows
    elif gen == "v7x":
        tm_cap, tf_cap = 512, 256      # smaller VMEM; roofline ~310 rows
    else:
        tm_cap = 512
        tf_cap = 256 if vmem <= 80 * _MIB else 512
    two_cores = gen == "v7x"
    return {"vmem": vmem, "usable": usable, "tm_cap": tm_cap,
            "tf_cap": tf_cap, "two_cores": two_cores, "gen": gen}


def _round_up(x, m):
    return ((x + m - 1) // m) * m


def _vmem_estimate(tm, tf, d_model, cb, ob, k_tiles):
    """Per-step VMEM footprint (double-buffer factors included once)."""
    est = (2 * tm * d_model * cb            # x tile (double-buffered)
           + 2 * 2 * d_model * tf * cb      # W_up + W_gate chunks
           + 2 * 2 * tf * 4                 # b_up + b_gate chunks
           + 2 * tf * d_model * cb          # W2 chunk
           + 2 * d_model * 4                # b2
           + 2 * tm * d_model * ob          # output tile
           + 3 * tm * tf * 4                # up / gate / a f32 temporaries
           + tm * tf * cb)                  # a cast to MXU dtype
    if k_tiles > 1:
        est += tm * d_model * 4             # f32 accumulator scratch
    return est


def _ff_tile_candidates(d_ff, cap):
    """128-aligned divisors of d_ff (descending), capped; fallback: d_ff."""
    cands = []
    t = (min(cap, d_ff) // 128) * 128
    while t >= 128:
        if d_ff % t == 0:
            cands.append(t)
        t -= 128
    if not cands:
        cands = [d_ff]
    return cands


def _choose_tiles(M, d_model, d_ff, cb, ob, prof, block_rows, ff_block):
    budget = 0.9 * prof["usable"]

    # ---- row tile (M axis) ----
    if block_rows is not None:
        tm = min(block_rows, M)
    else:
        tm = min(prof["tm_cap"], M)
        if prof["two_cores"] and M > 256:
            # Keep >= 2 row tiles so both v7x TensorCores get work.
            tm = min(tm, _round_up(-(-M // 2), 16))
    if tm < M:
        tm = max(16, (tm // 16) * 16)   # bf16 packs 2 rows per sublane

    def fits(tm_, tf_, kt):
        return _vmem_estimate(tm_, tf_, d_model, cb, ob, kt) <= budget

    def pick_tf(tm_):
        if ff_block is not None:
            return ff_block
        # Resident-weight path: whole d_ff per step -> weights DMA'd once.
        if fits(tm_, d_ff, 1):
            return d_ff
        for tf_ in _ff_tile_candidates(d_ff, prof["tf_cap"]):
            if fits(tm_, tf_, d_ff // tf_):
                return tf_
        return None

    tf = pick_tf(tm)
    while tf is None and tm > 128:
        tm = max(128, ((tm // 2) // 16) * 16)
        tf = pick_tf(tm)
    if tf is None:
        tf = _ff_tile_candidates(d_ff, prof["tf_cap"])[-1]
    return tm, tf


# --------------------------------------------------------------------------
# Parameter prep (done ONCE at init, not per forward call)
# --------------------------------------------------------------------------
def prepare_ffn_params(w1, b1, w2, b2, compute_dtype=jnp.bfloat16):
    """w1: (d_model, 2*d_ff), b1: (2*d_ff,), w2: (d_ff, d_model), b2: (d_model,).
    Weights are stored pre-transposed relative to nn.Linear (row-major matmul).
    First d_ff columns of fc1 = value ('up'), last d_ff = gate, matching
    `x, gate = fc1(x).chunk(2, -1); silu(gate) * x`."""
    d_ff = w1.shape[1] // 2
    assert 2 * d_ff == w1.shape[1]
    return {
        "w_up": w1[:, :d_ff].astype(compute_dtype),
        "w_gate": w1[:, d_ff:].astype(compute_dtype),
        "b_up": b1[:d_ff].reshape(1, d_ff).astype(jnp.float32),
        "b_gate": b1[d_ff:].reshape(1, d_ff).astype(jnp.float32),
        "w2": w2.astype(compute_dtype),
        "b2": b2.reshape(1, -1).astype(jnp.float32),
        "compute_dtype": compute_dtype,
    }


# --------------------------------------------------------------------------
# Forward wrapper
# --------------------------------------------------------------------------
def position_wise_feed_forward(x, params, *, block_rows=None, ff_block=None):
    """x: (B, S, d_model); params from prepare_ffn_params."""
    compute_dtype = params["compute_dtype"]
    w_up, w_gate = params["w_up"], params["w_gate"]
    b_up, b_gate = params["b_up"], params["b_gate"]
    w2c, b2_2d = params["w2"], params["b2"]

    B, S, d_model = x.shape
    d_ff = w_up.shape[1]
    M = B * S

    cb = jnp.dtype(compute_dtype).itemsize
    ob = jnp.dtype(x.dtype).itemsize

    prof = _tpu_profile()
    if ff_block is not None:
        assert d_ff % ff_block == 0, "ff_block must divide d_ff"
    tm, tf = _choose_tiles(M, d_model, d_ff, cb, ob, prof, block_rows, ff_block)

    m_tiles = -(-M // tm)
    M_pad = m_tiles * tm
    k_tiles = d_ff // tf

    x2 = x.reshape(M, d_model).astype(compute_dtype)
    if M_pad > M:
        x2 = jnp.pad(x2, ((0, M_pad - M), (0, 0)))

    vmem_est = _vmem_estimate(tm, tf, d_model, cb, ob, k_tiles)
    vmem_limit = int(min(prof["usable"],
                         max(32 * _MIB, vmem_est + vmem_est // 4 + 2 * _MIB)))

    weight_stream = 1 if k_tiles == 1 else m_tiles
    cost = pl.CostEstimate(
        flops=6 * M * d_model * d_ff,
        transcendentals=M * d_ff,
        bytes_accessed=(M_pad * d_model * (cb + ob)
                        + weight_stream * 3 * d_model * d_ff * cb
                        + (2 * d_ff + d_model) * 4),
    )

    if k_tiles == 1:
        # Resident weights: 1-D grid over M, constant weight index maps ->
        # weight blocks are fetched once and reused across all M tiles.
        kernel = functools.partial(_ffn_kernel_direct, compute_dtype=compute_dtype)
        grid = (m_tiles,)
        in_specs = [
            pl.BlockSpec((tm, d_model), lambda i: (i, 0)),     # x tile
            pl.BlockSpec((d_model, d_ff), lambda i: (0, 0)),   # W_up (resident)
            pl.BlockSpec((d_model, d_ff), lambda i: (0, 0)),   # W_gate (resident)
            pl.BlockSpec((1, d_ff), lambda i: (0, 0)),         # b_up
            pl.BlockSpec((1, d_ff), lambda i: (0, 0)),         # b_gate
            pl.BlockSpec((d_ff, d_model), lambda i: (0, 0)),   # W2 (resident)
            pl.BlockSpec((1, d_model), lambda i: (0, 0)),      # b2
        ]
        out_specs = pl.BlockSpec((tm, d_model), lambda i: (i, 0))
        scratch_shapes = []
        dim_sem = ("parallel",)
    else:
        kernel = functools.partial(_ffn_kernel_acc, compute_dtype=compute_dtype)
        grid = (m_tiles, k_tiles)
        in_specs = [
            pl.BlockSpec((tm, d_model), lambda i, k: (i, 0)),  # x tile
            pl.BlockSpec((d_model, tf), lambda i, k: (0, k)),  # W_up chunk
            pl.BlockSpec((d_model, tf), lambda i, k: (0, k)),  # W_gate chunk
            pl.BlockSpec((1, tf), lambda i, k: (0, k)),        # b_up chunk
            pl.BlockSpec((1, tf), lambda i, k: (0, k)),        # b_gate chunk
            pl.BlockSpec((tf, d_model), lambda i, k: (k, 0)),  # W2 chunk
            pl.BlockSpec((1, d_model), lambda i, k: (0, 0)),   # b2
        ]
        out_specs = pl.BlockSpec((tm, d_model), lambda i, k: (i, 0))
        scratch_shapes = [pltpu.VMEM((tm, d_model), jnp.float32)]
        dim_sem = ("parallel", "arbitrary")

    out = pl.pallas_call(
        kernel,
        out_shape=jax.ShapeDtypeStruct((M_pad, d_model), x.dtype),
        grid_spec=pltpu.PrefetchScalarGridSpec(
            num_scalar_prefetch=0,
            grid=grid,
            in_specs=in_specs,
            out_specs=out_specs,
            scratch_shapes=scratch_shapes,
        ),
        compiler_params=pltpu.CompilerParams(
            dimension_semantics=dim_sem,
            vmem_limit_bytes=vmem_limit,
        ),
        cost_estimate=cost,
    )(x2, w_up, w_gate, b_up, b_gate, w2c, b2_2d)

    if M_pad > M:
        out = out[:M]
    return out.reshape(B, S, d_model)


# --------------------------------------------------------------------------
# Reference (matched to the kernel's compute dtype)
# --------------------------------------------------------------------------
def _reference(x, w1, b1, w2, b2, compute_dtype=jnp.bfloat16):
    d_ff = w1.shape[1] // 2
    xc = x.astype(compute_dtype).astype(jnp.float32)
    w1c = w1.astype(compute_dtype).astype(jnp.float32)
    h = jnp.einsum("bsd,df->bsf", xc, w1c) + b1
    up, gate = h[..., :d_ff], h[..., d_ff:]
    a = jax.nn.silu(gate) * up
    a = a.astype(compute_dtype).astype(jnp.float32)
    w2c = w2.astype(compute_dtype).astype(jnp.float32)
    out = jnp.einsum("bsf,fd->bsd", a, w2c) + b2
    return out.astype(x.dtype)


# --------------------------------------------------------------------------
# Self-test
# --------------------------------------------------------------------------
if __name__ == "__main__":
    key = jax.random.PRNGKey(0)

    def make_params(k, d_model, d_ff):
        k1, k2, k3, k4 = jax.random.split(k, 4)
        bound1 = 1.0 / (d_model ** 0.5)
        w1 = jax.random.uniform(k1, (d_model, 2 * d_ff), jnp.float32, -bound1, bound1)
        b1 = jax.random.uniform(k2, (2 * d_ff,), jnp.float32, -bound1, bound1)
        bound2 = 1.0 / (d_ff ** 0.5)
        w2 = jax.random.uniform(k3, (d_ff, d_model), jnp.float32, -bound2, bound2)
        b2 = jax.random.uniform(k4, (d_model,), jnp.float32, -bound2, bound2)
        return w1, b1, w2, b2

    kx1, kp1, kx2, kp2 = jax.random.split(key, 4)

    # Case 1: small shapes consistent with the module (full-extent blocks,
    # resident-weight direct path).
    batch, seq, d_model, d_ff = 2, 8, 32, 64
    x = jax.random.normal(kx1, (batch, seq, d_model), dtype=jnp.float32)
    w1, b1, w2, b2 = make_params(kp1, d_model, d_ff)
    params = prepare_ffn_params(w1, b1, w2, b2)
    out = jax.block_until_ready(position_wise_feed_forward(x, params))
    ref = _reference(x, w1, b1, w2, b2)
    assert out.shape == (batch, seq, d_model)
    assert jnp.allclose(out, ref, atol=2e-2, rtol=2e-2), "case-1 mismatch"

    # Case 2: exercises the tiled M axis and the d_ff-accumulation path.
    batch2, seq2, d_model2, d_ff2 = 4, 128, 128, 512
    x2 = jax.random.normal(kx2, (batch2, seq2, d_model2), dtype=jnp.float32)
    w1b, b1b, w2b, b2b = make_params(kp2, d_model2, d_ff2)
    params2 = prepare_ffn_params(w1b, b1b, w2b, b2b)
    out2 = jax.block_until_ready(
        position_wise_feed_forward(x2, params2, block_rows=256, ff_block=256))
    ref2 = _reference(x2, w1b, b1b, w2b, b2b)
    assert out2.shape == (batch2, seq2, d_model2)
    assert jnp.allclose(out2, ref2, atol=2e-2, rtol=2e-2), "case-2 mismatch"

    print("KERNEL_OK")
</pallas_src>

<mosaic_0001>
module attributes {stable_mosaic.version = 11 : i64} {
  func.func @_ffn_kernel_direct(%arg0: i32, %arg1: memref<16x32xbf16, #tpu.memory_space<vmem>>, %arg2: memref<32x64xbf16, #tpu.memory_space<vmem>>, %arg3: memref<32x64xbf16, #tpu.memory_space<vmem>>, %arg4: memref<1x64xf32, #tpu.memory_space<vmem>>, %arg5: memref<1x64xf32, #tpu.memory_space<vmem>>, %arg6: memref<64x32xbf16, #tpu.memory_space<vmem>>, %arg7: memref<1x32xf32, #tpu.memory_space<vmem>>, %arg8: memref<16x32xf32, #tpu.memory_space<vmem>>) attributes {dimension_semantics = [#tpu.dimension_semantics<parallel>], iteration_bounds = array<i64: 1>, scalar_prefetch = 0 : i64, scratch_operands = 0 : i64, tpu.core_type = #tpu.core_type<tc>, window_params = [{transform_indices = @transform_0, window_bounds = array<i64: 16, 32>}, {pipeline_mode = #tpu.pipeline_mode<synchronous>, transform_indices = @transform_1, window_bounds = array<i64: 32, 64>}, {pipeline_mode = #tpu.pipeline_mode<synchronous>, transform_indices = @transform_2, window_bounds = array<i64: 32, 64>}, {pipeline_mode = #tpu.pipeline_mode<synchronous>, transform_indices = @transform_3, window_bounds = array<i64: 1, 64>}, {pipeline_mode = #tpu.pipeline_mode<synchronous>, transform_indices = @transform_4, window_bounds = array<i64: 1, 64>}, {pipeline_mode = #tpu.pipeline_mode<synchronous>, transform_indices = @transform_5, window_bounds = array<i64: 64, 32>}, {pipeline_mode = #tpu.pipeline_mode<synchronous>, transform_indices = @transform_6, window_bounds = array<i64: 1, 32>}, {transform_indices = @transform_7, window_bounds = array<i64: 16, 32>}]} {
    %c0 = arith.constant 0 : index
    %c0_0 = arith.constant 0 : index
    %0 = vector.load %arg1[%c0, %c0_0] : memref<16x32xbf16, #tpu.memory_space<vmem>>, vector<16x32xbf16>
    %c0_1 = arith.constant 0 : index
    %c0_2 = arith.constant 0 : index
    %1 = vector.load %arg2[%c0_1, %c0_2] : memref<32x64xbf16, #tpu.memory_space<vmem>>, vector<32x64xbf16>
    %cst = arith.constant dense<0.000000e+00> : vector<16x64xf32>
    %2 = tpu.matmul %0, %1, %cst {dimension_numbers = #tpu.dot_dimension_numbers<[1], [0], [0], [1], [0, 0, 1, 1], [], []>} : vector<16x32xbf16>, vector<32x64xbf16>, vector<16x64xf32> -> vector<16x64xf32>
    %c0_3 = arith.constant 0 : index
    %c0_4 = arith.constant 0 : index
    %3 = vector.load %arg4[%c0_3, %c0_4] : memref<1x64xf32, #tpu.memory_space<vmem>>, vector<1x64xf32>
    %4 = vector.broadcast %3 : vector<1x64xf32> to vector<16x64xf32>
    %5 = arith.addf %2, %4 : vector<16x64xf32>
    %c0_5 = arith.constant 0 : index
    %c0_6 = arith.constant 0 : index
    %6 = vector.load %arg3[%c0_5, %c0_6] : memref<32x64xbf16, #tpu.memory_space<vmem>>, vector<32x64xbf16>
    %cst_7 = arith.constant dense<0.000000e+00> : vector<16x64xf32>
    %7 = tpu.matmul %0, %6, %cst_7 {dimension_numbers = #tpu.dot_dimension_numbers<[1], [0], [0], [1], [0, 0, 1, 1], [], []>} : vector<16x32xbf16>, vector<32x64xbf16>, vector<16x64xf32> -> vector<16x64xf32>
    %c0_8 = arith.constant 0 : index
    %c0_9 = arith.constant 0 : index
    %8 = vector.load %arg5[%c0_8, %c0_9] : memref<1x64xf32, #tpu.memory_space<vmem>>, vector<1x64xf32>
    %9 = vector.broadcast %8 : vector<1x64xf32> to vector<16x64xf32>
    %10 = arith.addf %7, %9 : vector<16x64xf32>
    %11 = arith.negf %10 : vector<16x64xf32>
    %12 = math.exp %11 : vector<16x64xf32>
    %cst_10 = arith.constant 1.000000e+00 : f32
    %13 = vector.broadcast %cst_10 : f32 to vector<16x64xf32>
    %14 = arith.addf %13, %12 : vector<16x64xf32>
    %15 = arith.divf %13, %14 : vector<16x64xf32>
    %16 = arith.mulf %10, %15 : vector<16x64xf32>
    %17 = arith.mulf %16, %5 : vector<16x64xf32>
    %18 = arith.truncf %17 : vector<16x64xf32> to vector<16x64xbf16>
    %c0_11 = arith.constant 0 : index
    %c0_12 = arith.constant 0 : index
    %19 = vector.load %arg6[%c0_11, %c0_12] : memref<64x32xbf16, #tpu.memory_space<vmem>>, vector<64x32xbf16>
    %cst_13 = arith.constant dense<0.000000e+00> : vector<16x32xf32>
    %20 = tpu.matmul %18, %19, %cst_13 {dimension_numbers = #tpu.dot_dimension_numbers<[1], [0], [0], [1], [0, 0, 1, 1], [], []>} : vector<16x64xbf16>, vector<64x32xbf16>, vector<16x32xf32> -> vector<16x32xf32>
    %c0_14 = arith.constant 0 : index
    %c0_15 = arith.constant 0 : index
    %21 = vector.load %arg7[%c0_14, %c0_15] : memref<1x32xf32, #tpu.memory_space<vmem>>, vector<1x32xf32>
    %22 = vector.broadcast %21 : vector<1x32xf32> to vector<16x32xf32>
    %23 = arith.addf %20, %22 : vector<16x32xf32>
    %c0_16 = arith.constant 0 : index
    %c0_17 = arith.constant 0 : index
    %24 = vector.load %arg8[%c0_16, %c0_17] : memref<16x32xf32, #tpu.memory_space<vmem>>, vector<16x32xf32>
    tpu.vector_store %arg8[%c0_16, %c0_17], %23 {strides = array<i32>} : memref<16x32xf32, #tpu.memory_space<vmem>>, vector<16x32xf32>,
    return
  }
  func.func @transform_0(%arg0: i32) -> (i32, i32) {
    %c0_i32 = arith.constant 0 : i32
    %c0_i32_0 = arith.constant 0 : i32
    return %arg0, %c0_i32 : i32, i32
  }
  func.func @transform_1(%arg0: i32) -> (i32, i32) {
    %c0_i32 = arith.constant 0 : i32
    %c0_i32_0 = arith.constant 0 : i32
    %c0_i32_1 = arith.constant 0 : i32
    return %c0_i32, %c0_i32_0 : i32, i32
  }
  func.func @transform_2(%arg0: i32) -> (i32, i32) {
    %c0_i32 = arith.constant 0 : i32
    %c0_i32_0 = arith.constant 0 : i32
    %c0_i32_1 = arith.constant 0 : i32
    return %c0_i32, %c0_i32_0 : i32, i32
  }
  func.func @transform_3(%arg0: i32) -> (i32, i32) {
    %c0_i32 = arith.constant 0 : i32
    %c0_i32_0 = arith.constant 0 : i32
    %c0_i32_1 = arith.constant 0 : i32
    return %c0_i32, %c0_i32_0 : i32, i32
  }
  func.func @transform_4(%arg0: i32) -> (i32, i32) {
    %c0_i32 = arith.constant 0 : i32
    %c0_i32_0 = arith.constant 0 : i32
    %c0_i32_1 = arith.constant 0 : i32
    return %c0_i32, %c0_i32_0 : i32, i32
  }
  func.func @transform_5(%arg0: i32) -> (i32, i32) {
    %c0_i32 = arith.constant 0 : i32
    %c0_i32_0 = arith.constant 0 : i32
    %c0_i32_1 = arith.constant 0 : i32
    return %c0_i32, %c0_i32_0 : i32, i32
  }
  func.func @transform_6(%arg0: i32) -> (i32, i32) {
    %c0_i32 = arith.constant 0 : i32
    %c0_i32_0 = arith.constant 0 : i32
    %c0_i32_1 = arith.constant 0 : i32
    return %c0_i32, %c0_i32_0 : i32, i32
  }
  func.func @transform_7(%arg0: i32) -> (i32, i32) {
    %c0_i32 = arith.constant 0 : i32
    %c0_i32_0 = arith.constant 0 : i32
    return %arg0, %c0_i32 : i32, i32
  }
}

</mosaic_0001>

<llo_original>
// kernel: tpu_custom_call.1
$region0: #{tpu_custom_call.1}
  #allocation0 [shape = 'u32[]', space=smem, size = 0x4, offset = 0x4, fixed_abs, tag = 'smem constant byte address 0x4 - core index']
  #allocation1 [shape = 'u32[72,128]{1,0:T(1,128)}', space=vmem, size = 0x9000, scoped, tag = 'internal scratch']
  %s0 = inlined_call_operand.vmem [shape: bf16[16,32], index: 0, kind: input, shape index: {}]
  %s1 = inlined_call_operand.vmem [shape: bf16[32,64], index: 1, kind: input, shape index: {}]
  %s2 = inlined_call_operand.vmem [shape: bf16[32,64], index: 2, kind: input, shape index: {}]
  %s3 = inlined_call_operand.vmem [shape: f32[1,64], index: 3, kind: input, shape index: {}]
  %s4 = inlined_call_operand.vmem [shape: f32[1,64], index: 4, kind: input, shape index: {}]
  %s5 = inlined_call_operand.vmem [shape: bf16[64,32], index: 5, kind: input, shape index: {}]
  %s6 = inlined_call_operand.vmem [shape: f32[1,32], index: 6, kind: input, shape index: {}]
  %s7 = inlined_call_operand.hbm [shape: f32[16,32], index: 7, kind: output, shape index: {}]
  %s8 = sld [smem:[#allocation0]]
  $region38: #{tpu_custom_call.1} parent=0
    _
  %s10 = ssub.s32 1, %s8
  %s11 = scalar_select 0, %s10, %s8
  $region1: #{tpu_custom_call.1} parent=0
    #allocation2 [shape = 'u8[8192]{0}', space=vmem, size = 0x2000, scoped, tag = 'output window, operand 0, single buffered']
    #allocation3 [shape = 's32[1]{0}', space=sflag, size = 0x4, scoped, tag = 'scoped memory for tpu_custom_call.1']
    %12 = vsyncpa [#allocation3], 0
    // Predicated region
    $region2: #{tpu_custom_call.1} parent=1 // pred_check
      _
    $region3: #{tpu_custom_call.1} parent=1 // pred_check_branch
      %14 = sbr.rel (0) target = $region5
    $region4: #{tpu_custom_call.1} parent=1 // pred_region
      _
    $region5: #{tpu_custom_call.1} parent=1 // pred_fallthru
      _
    // Predicated region
    $region6: #{tpu_custom_call.1} parent=1 // pred_check
      _
    $region7: #{tpu_custom_call.1} parent=1 // pred_check_branch
      %16 = sbr.rel (0) target = $region9
    $region8: #{tpu_custom_call.1} parent=1 // pred_region
      _
    $region9: #{tpu_custom_call.1} parent=1 // pred_fallthru
      _
    // Predicated region
    $region10: #{tpu_custom_call.1} parent=1 // pred_check
      _
    $region11: #{tpu_custom_call.1} parent=1 // pred_check_branch
      %18 = sbr.rel (0) target = $region13
    $region12: #{tpu_custom_call.1} parent=1 // pred_region
      _
    $region13: #{tpu_custom_call.1} parent=1 // pred_fallthru
      _
    // Predicated region
    $region14: #{tpu_custom_call.1} parent=1 // pred_check
      _
    $region15: #{tpu_custom_call.1} parent=1 // pred_check_branch
      %20 = sbr.rel (0) target = $region17
    $region16: #{tpu_custom_call.1} parent=1 // pred_region
      _
    $region17: #{tpu_custom_call.1} parent=1 // pred_fallthru
      _
    // Predicated region
    $region18: #{tpu_custom_call.1} parent=1 // pred_check
      _
    $region19: #{tpu_custom_call.1} parent=1 // pred_check_branch
      %22 = sbr.rel (0) target = $region21
    $region20: #{tpu_custom_call.1} parent=1 // pred_region
      _
    $region21: #{tpu_custom_call.1} parent=1 // pred_fallthru
      _
    // Predicated region
    $region22: #{tpu_custom_call.1} parent=1 // pred_check
      _
    $region23: #{tpu_custom_call.1} parent=1 // pred_check_branch
      %24 = sbr.rel (0) target = $region25
    $region24: #{tpu_custom_call.1} parent=1 // pred_region
      _
    $region25: #{tpu_custom_call.1} parent=1 // pred_fallthru
      _
    // Predicated region
    $region26: #{tpu_custom_call.1} parent=1 // pred_check
      _
    $region27: #{tpu_custom_call.1} parent=1 // pred_check_branch
      %26 = sbr.rel (0) target = $region29
    $region28: #{tpu_custom_call.1} parent=1 // pred_region
      _
    $region29: #{tpu_custom_call.1} parent=1 // pred_fallthru
      _
    %v28 = vld [vmem:[%s0] sm:$0xf]
    %v29 = vld [vmem:[%s0 + $0x4] sm:$0xf]
    %v30 = vld [vmem:[%s1] sm:$0xf]
    %v31 = vld [vmem:[%s1 + $0x4] sm:$0xf]
    %v32 = vld [vmem:[%s1 + $0x8] sm:$0xf]
    %v33 = vld [vmem:[%s1 + $0xc] sm:$0xf]
    %v34 = vld [vmem:[%s3] sm:$0x1]
    %v36 = vperm.slane %v34, 0
    %v40 = vunpack.c.l.b16 %v28
    %v41 = vunpack.c.l.b16 %v29
    %v42 = vpack.c.b16 %v41, %v40
    %v47 = vunpack.c.l.b16 %v30
    %v48 = vunpack.c.l.b16 %v31
    %v49 = vunpack.c.l.b16 %v32
    %v50 = vunpack.c.l.b16 %v33
    %v51 = vpack.c.b16 %v48, %v47
    %v52 = vpack.c.b16 %v50, %v49
    %vm55 = vcmask 261120
    %v57 = vsel %vm55, %v42, 0
    %59 = vmatpush.bf16.msra.mxu0 0
    %60 = vmatpush.bf16.msra.mxu0 0
    %61 = vmatpush.bf16.msra.mxu0 0
    %62 = vmatpush.bf16.msra.mxu0 0
    %63 = vmatpush.bf16.msra.mxu0 0
    %64 = vmatpush.bf16.msra.mxu0 0
    %65 = vmatpush.bf16.msra.mxu0 %v52
    %66 = vmatpush.bf16.msra.mxu0 %v51
    %67 = vmatmul.bf16.gmra.mxu0 %v57
    %v68 = vpop.f32.mrf.mxu0
    %v69 = vadd.f32 %v36, %v68
    %v70 = vpop.f32.mrf.mxu0
    %v71 = vadd.f32 %v36, %v70
    %72 = vdwg.mxu0
    %v73 = vld [vmem:[%s2] sm:$0xf]
    %v74 = vld [vmem:[%s2 + $0x4] sm:$0xf]
    %v75 = vld [vmem:[%s2 + $0x8] sm:$0xf]
    %v76 = vld [vmem:[%s2 + $0xc] sm:$0xf]
    %v77 = vld [vmem:[%s4] sm:$0x1]
    %v79 = vperm.slane %v77, 0
    %v85 = vunpack.c.l.b16 %v73
    %v86 = vunpack.c.l.b16 %v74
    %v87 = vunpack.c.l.b16 %v75
    %v88 = vunpack.c.l.b16 %v76
    %v89 = vpack.c.b16 %v86, %v85
    %v90 = vpack.c.b16 %v88, %v87
    %93 = vmatpush.bf16.msra.mxu0 0
    %94 = vmatpush.bf16.msra.mxu0 0
    %95 = vmatpush.bf16.msra.mxu0 0
    %96 = vmatpush.bf16.msra.mxu0 0
    %97 = vmatpush.bf16.msra.mxu0 0
    %98 = vmatpush.bf16.msra.mxu0 0
    %99 = vmatpush.bf16.msra.mxu0 %v90
    %100 = vmatpush.bf16.msra.mxu0 %v89
    %101 = vmatmul.bf16.gmra.mxu0 %v57
    %v102 = vpop.f32.mrf.mxu0
    %v103 = vadd.f32 %v79, %v102
    %v104 = vpop.f32.mrf.mxu0
    %v105 = vadd.f32 %v79, %v104
    %106 = vdwg.mxu0
    %v107 = vxor.u32 %v103, 2147483648
    %v108 = vxor.u32 %v105, 2147483648
    %v109 = vmul.f32 %v107, 1.442695
    %v110 = vpow.pop %v109
    %v111 = vmul.f32 %v108, 1.442695
    %v112 = vpow.pop %v111
    %v113 = vadd.f32 %v110, 1.0
    %v114 = vadd.f32 %v112, 1.0
    %v115 = vrcp.pop %v113
    %v116 = vmul.f32 %v113, %v115
    %v117 = vsub.f32 1.0, %v116
    %v118 = vmul.f32 %v115, %v117
    %v119 = vadd.f32 %v115, %v118
    %vm120 = vweird.f32 %v113
    %vm121 = vweird.f32 %v115
    %vm122 = vmor %vm120, %vm121
    %v123 = vsel %vm122, %v115, %v119
    %v124 = vand.u32 2147483647, %v113
    %vm125 = vcmp.eq.f32.partialorder %v124, 8.507059e+37
    %v126 = vand.u32 %v113, 2147483648
    %v127 = vor.u32 1.1754944e-38, %v126
    %v128 = vsel %vm125, %v127, %v123
    %v129 = vmul.f32 1.0, %v128
    %v130 = vrcp.pop %v114
    %v131 = vmul.f32 %v114, %v130
    %v132 = vsub.f32 1.0, %v131
    %v133 = vmul.f32 %v130, %v132
    %v134 = vadd.f32 %v130, %v133
    %vm135 = vweird.f32 %v114
    %vm136 = vweird.f32 %v130
    %vm137 = vmor %vm135, %vm136
    %v138 = vsel %vm137, %v130, %v134
    %v139 = vand.u32 2147483647, %v114
    %vm140 = vcmp.eq.f32.partialorder %v139, 8.507059e+37
    %v141 = vand.u32 %v114, 2147483648
    %v142 = vor.u32 1.1754944e-38, %v141
    %v143 = vsel %vm140, %v142, %v138
    %v144 = vmul.f32 1.0, %v143
    %v145 = vmul.f32 %v103, %v129
    %v146 = vmul.f32 %v105, %v144
    %v147 = vmul.f32 %v145, %v69
    %v148 = vmul.f32 %v146, %v71
    %v149 = vpack.c.bf16 %v148, %v147
    %v150 = vld [vmem:[%s5] sm:$0xf]
    %v151 = vld [vmem:[%s5 + $0x4] sm:$0xf]
    %v152 = vld [vmem:[%s5 + $0x8] sm:$0xf]
    %v153 = vld [vmem:[%s5 + $0xc] sm:$0xf]
    %v154 = vld [vmem:[%s5 + $0x10] sm:$0xf]
    %v155 = vld [vmem:[%s5 + $0x14] sm:$0xf]
    %v156 = vld [vmem:[%s5 + $0x18] sm:$0xf]
    %v157 = vld [vmem:[%s5 + $0x1c] sm:$0xf]
    %v158 = vld [vmem:[%s6] sm:$0x1]
    %v160 = vperm.slane %v158, 0
    %v170 = vunpack.c.l.b16 %v150
    %v171 = vunpack.c.l.b16 %v151
    %v172 = vunpack.c.l.b16 %v152
    %v173 = vunpack.c.l.b16 %v153
    %v174 = vunpack.c.l.b16 %v154
    %v175 = vunpack.c.l.b16 %v155
    %v176 = vunpack.c.l.b16 %v156
    %v177 = vunpack.c.l.b16 %v157
    %v178 = vpack.c.b16 %v171, %v170
    %v179 = vpack.c.b16 %v173, %v172
    %v180 = vpack.c.b16 %v175, %v174
    %v181 = vpack.c.b16 %v177, %v176
    %vm186 = vcmask 523264
    %v188 = vsel %vm186, %v149, 0
    %190 = vmatpush.bf16.msra.mxu0 0
    %191 = vmatpush.bf16.msra.mxu0 0
    %192 = vmatpush.bf16.msra.mxu0 0
    %193 = vmatpush.bf16.msra.mxu0 0
    %194 = vmatpush.bf16.msra.mxu0 %v181
    %195 = vmatpush.bf16.msra.mxu0 %v180
    %196 = vmatpush.bf16.msra.mxu0 %v179
    %197 = vmatpush.bf16.msra.mxu0 %v178
    %198 = vmatmul.bf16.gmra.mxu0 %v188
    %v199 = vpop.f32.mrf.mxu0
    %v200 = vadd.f32 %v160, %v199
    %v201 = vpop.f32.mrf.mxu0
    %v202 = vadd.f32 %v160, %v201
    %203 = vdwg.mxu0
    %204 = vst.msk [vmem:[#allocation2] sm:$0xff] %vm55, %v200
    %205 = vst.msk [vmem:[#allocation2 + $0x8] sm:$0xff] %vm55, %v202
    // Predicated region
    $region30: #{tpu_custom_call.1} parent=1 // pred_check
      _
    $region31: #{tpu_custom_call.1} parent=1 // pred_check_branch
      %207 = sbr.rel (0) target = $region33
    $region32: #{tpu_custom_call.1} parent=1 // pred_region
      %209 = vsyncadd [#allocation3], 0
      %s210 = sshll.u32 [#allocation2], 4
      %s211 = int_to_ptr.vmem [resolvable:$true] %s210
      %s212 = sshll.u32 %s7, 4
      %s213 = int_to_ptr.hbm [resolvable:$true] %s212
      %218 = dma.vmem_to_hbm [thread:$0]  %s211, 256, %s213, [#allocation3], 128, 128, 8
    $region33: #{tpu_custom_call.1} parent=1 // pred_fallthru
      _
    // Predicated region
    $region34: #{tpu_custom_call.1} parent=1 // pred_check
      _
    $region35: #{tpu_custom_call.1} parent=1 // pred_check_branch
      %220 = sbr.rel (0) target = $region37
    $region36: #{tpu_custom_call.1} parent=1 // pred_region
      %222 = dma.done [#allocation3], 256
    $region37: #{tpu_custom_call.1} parent=1 // pred_fallthru
      _
    %223 = vsyncpa [#allocation3], 1

</llo_original>
